<compile_context>
chip_gen: v7x
topology: tpu7x:2x2x1
jax: 0.10.0
libtpu: 0.0.40
codegen_flags: <defaults>
</compile_context>

<pallas_src>
import functools
import math

import jax
import jax.numpy as jnp
from jax import lax
from jax.experimental import pallas as pl
from jax.experimental.pallas import tpu as pltpu


_LANE_TILE_CAP = 2048                   # max lane-axis tile (multiple of 128)
_MAX_ACC_ROWS = 4096                    # caps last-dim accumulator scratch at ~2 MiB
_SPLIT_THRESHOLD = 2 * 1024 * 1024      # only force 2-way parallel split for inputs >= 2 MiB


def _cdiv(a, b):
    return -(-a // b)


def _round_up(x, m):
    return ((x + m - 1) // m) * m


def _sublane(dtype):
    """Dtype-aware sublane tile: 8 for 4-byte, 16 for 2-byte, 32 for 1-byte dtypes."""
    return {1: 32, 2: 16}.get(jnp.dtype(dtype).itemsize, 8)


def _identity(op, dtype):
    """Identity value of the reduction in the given dtype (for masking / init)."""
    if op in ("sum", "mean"):
        return 0
    if jnp.issubdtype(jnp.dtype(dtype), jnp.floating):
        return float("-inf") if op == "max" else float("inf")
    info = jnp.iinfo(jnp.dtype(dtype))
    return int(info.min) if op == "max" else int(info.max)


def _hw_budget():
    """(per-input-block byte budget, vmem_limit_bytes), generation aware.

    v5e/v6e have 128 MiB VMEM -> 8 MiB blocks.  v7x (64 MiB physical / 32 MiB scoped)
    and unknown hardware -> conservative 6 MiB blocks within the 32 MiB scoped limit.
    """
    block_cap = 6 * 1024 * 1024
    vmem_limit = 32 * 1024 * 1024
    try:
        cap = getattr(pltpu.get_tpu_info(), "vmem_capacity_bytes", None)
        if cap is not None and cap >= 128 * 1024 * 1024:
            block_cap = 8 * 1024 * 1024
            vmem_limit = 48 * 1024 * 1024
    except Exception:
        pass
    return block_cap, vmem_limit


# --------------------------------------------------------------------------- kernels


def _reduce_mid_kernel(x_ref, o_ref, *scratch, op, scale, init, pad,
                       r_total, tile_r, mask_tail, use_scratch):
    """Block (tile_outer, tile_r, tile_inner) -> reduce the middle (sublane) axis.

    The accumulator is either a VMEM scratch (when a final down-cast is needed) or
    the output block itself (its index_map ignores the r axis so it stays resident).
    """
    acc_ref = scratch[0] if use_scratch else o_ref
    k = pl.program_id(2)

    @pl.when(k == 0)
    def _():
        acc_ref[...] = jnp.full(acc_ref.shape, init, acc_ref.dtype)

    x = x_ref[...]                                  # (tile_outer, tile_r, tile_inner)
    if mask_tail:
        row = lax.broadcasted_iota(jnp.int32, x.shape, 1)
        x = jnp.where(row < (r_total - k * tile_r), x, jnp.array(pad, dtype=x.dtype))

    if op in ("sum", "mean"):
        acc_ref[...] += jnp.sum(x.astype(acc_ref.dtype), axis=1)
    elif op == "max":
        acc_ref[...] = jnp.maximum(acc_ref[...], jnp.max(x, axis=1).astype(acc_ref.dtype))
    else:  # min
        acc_ref[...] = jnp.minimum(acc_ref[...], jnp.min(x, axis=1).astype(acc_ref.dtype))

    if use_scratch or op == "mean":
        @pl.when(k == pl.num_programs(2) - 1)
        def _():
            res = acc_ref[...]
            if op == "mean":
                res = res * scale
            o_ref[...] = res.astype(o_ref.dtype)


def _reduce_last_kernel(x_ref, o_ref, acc_ref, *, op, scale, init,
                        r_total, tile_r, mask_tail):
    """Block (tile_outer, tile_r) with r on the lane axis.

    Lane groups of 128 are combined on the VPU and accumulated into a
    (tile_outer, 128) scratch across r steps; one XLU cross-lane reduce at the end.
    """
    k = pl.program_id(1)

    @pl.when(k == 0)
    def _():
        acc_ref[...] = jnp.full(acc_ref.shape, init, acc_ref.dtype)

    acc_dt = acc_ref.dtype
    n_groups = tile_r // 128
    part = None
    for j in range(n_groups):                       # static slices: lane-dense loads
        xs = x_ref[:, j * 128:(j + 1) * 128].astype(acc_dt)
        if mask_tail:
            lane = lax.broadcasted_iota(jnp.int32, xs.shape, 1) + j * 128
            xs = jnp.where(lane < (r_total - k * tile_r), xs,
                           jnp.array(init, dtype=acc_dt))
        if part is None:
            part = xs
        elif op in ("sum", "mean"):
            part = part + xs
        elif op == "max":
            part = jnp.maximum(part, xs)
        else:
            part = jnp.minimum(part, xs)

    if op in ("sum", "mean"):
        acc_ref[...] += part
    elif op == "max":
        acc_ref[...] = jnp.maximum(acc_ref[...], part)
    else:
        acc_ref[...] = jnp.minimum(acc_ref[...], part)

    @pl.when(k == pl.num_programs(1) - 1)
    def _():
        a = acc_ref[...]
        if op in ("sum", "mean"):
            res = jnp.sum(a, axis=-1, keepdims=True)
        elif op == "max":
            res = jnp.max(a, axis=-1, keepdims=True)
        else:
            res = jnp.min(a, axis=-1, keepdims=True)
        if op == "mean":
            res = res * scale
        o_ref[...] = res.astype(o_ref.dtype)


# --------------------------------------------------------------------------- wrapper


def pallas_reduce(x, *, op="sum", dim=1, keepdim=False):
    """Equivalent of ModelDirect(operator=torch.<op>, kwargs={'dim': dim, 'keepdim': keepdim})(x).

    For torch.max / torch.min only the reduced *values* are returned.
    """
    if op not in ("sum", "mean", "max", "min"):
        raise ValueError(f"unsupported op: {op}")

    shape = x.shape
    ndim = len(shape)
    dim = dim % ndim

    outer = math.prod(shape[:dim]) if dim > 0 else 1
    r = shape[dim]
    inner = math.prod(shape[dim + 1:]) if dim + 1 < ndim else 1

    in_dtype = x.dtype
    is_float = jnp.issubdtype(in_dtype, jnp.floating)

    if op == "mean":
        # torch.mean rejects integer inputs; integers are promoted to f32 here.
        acc_dtype = jnp.float32
        out_dtype = in_dtype if is_float else jnp.float32
    elif op == "sum":
        acc_dtype = jnp.float32 if is_float else jnp.int32
        # TODO(synk): torch.sum on integer inputs returns int64; int32 is used here.
        out_dtype = in_dtype if is_float else jnp.int32
    else:  # max / min (values only)
        acc_dtype = in_dtype
        out_dtype = in_dtype

    pad = _identity(op, in_dtype)       # identity in the input dtype (tail masking)
    init = _identity(op, acc_dtype)     # identity in the accumulator dtype
    scale = 1.0 / float(r)
    itemsize = jnp.dtype(in_dtype).itemsize
    sub = _sublane(in_dtype)
    sub_out = _sublane(out_dtype)
    subm = max(sub, sub_out)

    block_cap, vmem_limit = _hw_budget()
    want_split = x.size * itemsize >= _SPLIT_THRESHOLD   # give v7x's 2nd TC work

    if inner == 1:
        # ---------------- last-dim reduction: r on the lane axis ----------------
        x2 = x.reshape(outer, r)
        r_lane = _round_up(r, 128)
        lane_budget = max(128, (block_cap // (subm * itemsize)) // 128 * 128)
        tile_r = min(r_lane, _LANE_TILE_CAP, lane_budget)

        rows_budget = max(subm, (block_cap // (tile_r * itemsize)) // subm * subm)
        tile_outer = min(_round_up(outer, subm), rows_budget, _MAX_ACC_ROWS)
        if want_split and _cdiv(outer, tile_outer) < 2 and outer >= 2 * subm:
            cand = _round_up(_cdiv(outer, 2), subm)
            if _cdiv(outer, cand) >= 2:
                tile_outer = cand

        grid = (_cdiv(outer, tile_outer), _cdiv(r, tile_r))
        mask_tail = (r % tile_r) != 0

        kernel = functools.partial(
            _reduce_last_kernel, op=op, scale=scale, init=init,
            r_total=r, tile_r=tile_r, mask_tail=mask_tail)

        out2 = pl.pallas_call(
            kernel,
            out_shape=jax.ShapeDtypeStruct((outer, 1), out_dtype),
            grid_spec=pltpu.PrefetchScalarGridSpec(
                num_scalar_prefetch=0,
                grid=grid,
                in_specs=[pl.BlockSpec((tile_outer, tile_r), lambda i, k: (i, k))],
                out_specs=pl.BlockSpec((tile_outer, 1), lambda i, k: (i, 0)),
                scratch_shapes=[pltpu.VMEM((tile_outer, 128), acc_dtype)],
            ),
            compiler_params=pltpu.CompilerParams(
                dimension_semantics=("parallel", "arbitrary"),
                vmem_limit_bytes=vmem_limit),
        )(x2)
    else:
        # ---------------- general path: reduce the middle axis of (outer, r, inner)
        x3 = x.reshape(outer, r, inner)
        inner_lane = _round_up(inner, 128)
        lane_budget = max(128, (block_cap // (sub * itemsize)) // 128 * 128)
        tile_inner = min(inner_lane, _LANE_TILE_CAP, lane_budget)
        if (want_split and outer == 1 and inner_lane > 128
                and _cdiv(inner, tile_inner) < 2):
            tile_inner = _round_up(_cdiv(inner_lane, 2), 128)   # 2 parallel inner tiles

        rows_budget = max(sub, (block_cap // (tile_inner * itemsize)) // sub * sub)
        if outer == 1:
            tile_r = min(_round_up(r, sub), rows_budget)
            tile_outer = 1
        else:
            # keep the output block sublane-aligned: tile_outer multiple of sub_out or == outer
            tile_r = min(_round_up(r, sub),
                         max(sub, (rows_budget // sub_out) // sub * sub))
            tile_outer = min(outer, max(1, rows_budget // tile_r))
            if tile_outer < outer:
                tile_outer = max(sub_out, (tile_outer // sub_out) * sub_out)
            if (want_split and outer >= 2 and _cdiv(outer, tile_outer) < 2
                    and _cdiv(inner, tile_inner) < 2):
                cand = _round_up(_cdiv(outer, 2), sub_out)
                if _cdiv(outer, cand) >= 2:
                    tile_outer = cand

        grid = (_cdiv(outer, tile_outer), _cdiv(inner, tile_inner), _cdiv(r, tile_r))
        mask_tail = (r % tile_r) != 0
        use_scratch = jnp.dtype(acc_dtype) != jnp.dtype(out_dtype)

        kernel = functools.partial(
            _reduce_mid_kernel, op=op, scale=scale, init=init, pad=pad,
            r_total=r, tile_r=tile_r, mask_tail=mask_tail, use_scratch=use_scratch)

        scratch_shapes = ([pltpu.VMEM((tile_outer, tile_inner), acc_dtype)]
                          if use_scratch else [])

        out2 = pl.pallas_call(
            kernel,
            out_shape=jax.ShapeDtypeStruct((outer, inner), out_dtype),
            grid_spec=pltpu.PrefetchScalarGridSpec(
                num_scalar_prefetch=0,
                grid=grid,
                in_specs=[pl.BlockSpec((tile_outer, tile_r, tile_inner),
                                       lambda i, j, k: (i, k, j))],
                out_specs=pl.BlockSpec((tile_outer, tile_inner),
                                       lambda i, j, k: (i, j)),
                scratch_shapes=scratch_shapes,
            ),
            compiler_params=pltpu.CompilerParams(
                dimension_semantics=("parallel", "parallel", "arbitrary"),
                vmem_limit_bytes=vmem_limit),
        )(x3)

    if keepdim:
        out_shape = shape[:dim] + (1,) + shape[dim + 1:]
    else:
        out_shape = shape[:dim] + shape[dim + 1:]
    return out2.reshape(out_shape)


# TODO(synk): torch.max/torch.min with dim= also return an indices tensor; only the
#             reduced values are produced here.


if __name__ == "__main__":
    key = jax.random.PRNGKey(0)
    x = jax.random.normal(key, (2, 4, 16, 16), dtype=jnp.float32)

    # ModelDirect(torch.sum, {"dim": 1, "keepdim": False})
    y = pallas_reduce(x, op="sum", dim=1, keepdim=False)
    jax.block_until_ready(y)
    ref = jnp.sum(x, axis=1)
    assert y.shape == ref.shape and jnp.allclose(y, ref, atol=1e-5, rtol=1e-5)

    # ModelDirect(torch.mean, {"dim": 2, "keepdim": True})
    y = pallas_reduce(x, op="mean", dim=2, keepdim=True)
    jax.block_until_ready(y)
    ref = jnp.mean(x, axis=2, keepdims=True)
    assert y.shape == ref.shape and jnp.allclose(y, ref, atol=1e-5, rtol=1e-5)

    # ModelDirect(torch.max, {"dim": -1, "keepdim": False}) -- values only (last-dim path)
    y = pallas_reduce(x, op="max", dim=-1, keepdim=False)
    jax.block_until_ready(y)
    ref = jnp.max(x, axis=-1)
    assert y.shape == ref.shape and jnp.allclose(y, ref)

    # ModelDirect(torch.min, {"dim": 0, "keepdim": False})
    y = pallas_reduce(x, op="min", dim=0, keepdim=False)
    jax.block_until_ready(y)
    ref = jnp.min(x, axis=0)
    assert y.shape == ref.shape and jnp.allclose(y, ref)

    # Awkward (non-128-multiple) shape exercising the in-kernel tail masking.
    xa = jax.random.normal(jax.random.PRNGKey(1), (3, 37, 70), dtype=jnp.float32)
    y = pallas_reduce(xa, op="sum", dim=1, keepdim=True)
    jax.block_until_ready(y)
    ref = jnp.sum(xa, axis=1, keepdims=True)
    assert y.shape == ref.shape and jnp.allclose(y, ref, atol=1e-4, rtol=1e-5)

    # Larger reduce dim exercising the multi-step accumulator over r.
    xb = jax.random.normal(jax.random.PRNGKey(2), (2, 4096, 128), dtype=jnp.float32)
    y = pallas_reduce(xb, op="mean", dim=1, keepdim=False)
    jax.block_until_ready(y)
    ref = jnp.mean(xb, axis=1)
    assert y.shape == ref.shape and jnp.allclose(y, ref, atol=1e-5, rtol=1e-4)

    # bf16 input exercising dtype-aware sublane tiling + f32 scratch with final down-cast.
    xc = jax.random.normal(jax.random.PRNGKey(3), (4, 33, 96)).astype(jnp.bfloat16)
    y = pallas_reduce(xc, op="sum", dim=1, keepdim=False)
    jax.block_until_ready(y)
    assert y.dtype == jnp.bfloat16
    ref = jnp.sum(xc.astype(jnp.float32), axis=1)
    assert y.shape == ref.shape and jnp.allclose(y.astype(jnp.float32), ref,
                                                 atol=0.05, rtol=0.02)

    print("KERNEL_OK")
</pallas_src>

<mosaic_0001>
module attributes {stable_mosaic.version = 11 : i64} {
  func.func @_reduce_mid_kernel(%arg0: i32, %arg1: i32, %arg2: i32, %arg3: memref<2x8x256xf32, #tpu.memory_space<vmem>>, %arg4: memref<2x256xf32, #tpu.memory_space<vmem>>) attributes {dimension_semantics = [#tpu.dimension_semantics<parallel>, #tpu.dimension_semantics<parallel>, #tpu.dimension_semantics<arbitrary>], iteration_bounds = array<i64: 1, 1, 1>, scalar_prefetch = 0 : i64, scratch_operands = 0 : i64, tpu.core_type = #tpu.core_type<tc>, window_params = [{transform_indices = @transform_0, window_bounds = array<i64: 2, 8, 256>}, {transform_indices = @transform_1, window_bounds = array<i64: 2, 256>}]} {
    %c0_i32 = arith.constant 0 : i32
    %0 = arith.cmpi eq, %arg2, %c0_i32 : i32
    %1 = arith.extui %0 : i1 to i32
    %c0_i32_0 = arith.constant 0 : i32
    %2 = arith.cmpi ne, %1, %c0_i32_0 : i32
    scf.if %2 {
      %cst_8 = arith.constant 0.000000e+00 : f32
      %15 = vector.broadcast %cst_8 : f32 to vector<2x256xf32>
      %c0_9 = arith.constant 0 : index
      %c0_10 = arith.constant 0 : index
      %16 = vector.load %arg4[%c0_9, %c0_10] : memref<2x256xf32, #tpu.memory_space<vmem>>, vector<2x256xf32>
      tpu.vector_store %arg4[%c0_9, %c0_10], %15 {strides = array<i32>} : memref<2x256xf32, #tpu.memory_space<vmem>>, vector<2x256xf32>,
    } else {
    }
    %c0 = arith.constant 0 : index
    %c0_1 = arith.constant 0 : index
    %c0_2 = arith.constant 0 : index
    %3 = vector.load %arg3[%c0, %c0_1, %c0_2] : memref<2x8x256xf32, #tpu.memory_space<vmem>>, vector<2x8x256xf32>
    %4 = tpu.iota {dimensions = array<i32: 1>} : vector<2x8x256xi32>
    %c8_i32 = arith.constant 8 : i32
    %5 = arith.muli %arg2, %c8_i32 : i32
    %c4_i32 = arith.constant 4 : i32
    %6 = arith.subi %c4_i32, %5 : i32
    %7 = vector.broadcast %6 : i32 to vector<2x8x256xi32>
    %8 = arith.cmpi slt, %4, %7 : vector<2x8x256xi32>
    %cst = arith.constant 0.000000e+00 : f32
    %9 = vector.broadcast %cst : f32 to vector<2x8x256xf32>
    %10 = arith.select %8, %3, %9 : vector<2x8x256xi1>, vector<2x8x256xf32>
    %c0_3 = arith.constant 0 : index
    %c0_4 = arith.constant 0 : index
    %11 = vector.load %arg4[%c0_3, %c0_4] : memref<2x256xf32, #tpu.memory_space<vmem>>, vector<2x256xf32>
    %cst_5 = arith.constant dense<0.000000e+00> : vector<2x256xf32>
    %12 = vector.multi_reduction <add>, %10, %cst_5 [1] : vector<2x8x256xf32> to vector<2x256xf32>
    %13 = arith.addf %11, %12 : vector<2x256xf32>
    %c0_6 = arith.constant 0 : index
    %c0_7 = arith.constant 0 : index
    %14 = vector.load %arg4[%c0_6, %c0_7] : memref<2x256xf32, #tpu.memory_space<vmem>>, vector<2x256xf32>
    tpu.vector_store %arg4[%c0_6, %c0_7], %13 {strides = array<i32>} : memref<2x256xf32, #tpu.memory_space<vmem>>, vector<2x256xf32>,
    return
  }
  func.func @transform_0(%arg0: i32, %arg1: i32, %arg2: i32) -> (i32, i32, i32) {
    %c0_i32 = arith.constant 0 : i32
    return %arg0, %arg2, %arg1 : i32, i32, i32
  }
  func.func @transform_1(%arg0: i32, %arg1: i32, %arg2: i32) -> (i32, i32) {
    %c0_i32 = arith.constant 0 : i32
    return %arg0, %arg1 : i32, i32
  }
}

</mosaic_0001>

<llo_original>
// kernel: tpu_custom_call.1
$region0: #{tpu_custom_call.1}
  #allocation0 [shape = 'u32[]', space=smem, size = 0x4, offset = 0x4, fixed_abs, tag = 'smem constant byte address 0x4 - core index']
  #allocation1 [shape = 'u32[144,128]{1,0:T(1,128)}', space=vmem, size = 0x12000, scoped, tag = 'internal scratch']
  #allocation6 [shape = 's32[]', space=sflag, size = 0x4, offset = 0, fixed_abs, tag = 'sflag constant byte address 0x0 - dummy sync flag']
  %s0 = inlined_call_operand.hbm [shape: f32[2,4,256], index: 0, kind: input, shape index: {}]
  %s1 = inlined_call_operand.hbm [shape: f32[2,256], index: 1, kind: output, shape index: {}]
  %s2 = sld [smem:[#allocation0]]
  $region22: #{tpu_custom_call.1} parent=0
    _
  %s4 = ssub.s32 1, %s2
  %s5 = scalar_select 0, %s4, %s2
  $region1: #{tpu_custom_call.1} parent=0
    #allocation2 [shape = 'u8[16384]{0}', space=vmem, size = 0x4000, scoped, tag = 'input window, operand 0, single buffered']
    #allocation3 [shape = 's32[1]{0}', space=sflag, size = 0x4, scoped, tag = 'scoped memory for tpu_custom_call.1']
    #allocation4 [shape = 's32[1]{0}', space=sflag, size = 0x4, scoped, tag = 'scoped memory for tpu_custom_call.1']
    #allocation5 [shape = 'u8[2048]{0}', space=vmem, size = 0x800, scoped, tag = 'output window, operand 0, single buffered']
    %6 = vsyncpa [#allocation3], 0
    %7 = vsyncpa [#allocation4], 0
    // Predicated region
    $region2: #{tpu_custom_call.1} parent=1 // pred_check
      _
    $region3: #{tpu_custom_call.1} parent=1 // pred_check_branch
      %9 = sbr.rel (0) target = $region5
    $region4: #{tpu_custom_call.1} parent=1 // pred_region
      #allocation7 [shape = 'u32[6]{0}', space=smem, size = 0x18, scoped, tag = 'DMA stride descriptor']
      %s11 = ssub.s32 512, 256
      %12 = vsyncadd [#allocation3], %s11
      %s14 = sshll.u32 1, 14
      %s15 = sxor.u32 4294967295, %s14
      %s17 = sld [smem:[#allocation0]]
      %s18 = sadd.s32 2, %s17
      %s20 = sshll.u32 7, 26
      %s21 = sxor.u32 4294967295, %s20
      %s22 = sand.u32 0, %s21
      %s23 = sshll.u32 %s18, 26
      %s24 = sor.u32 %s22, %s23
      %s25 = sshll.u32 [#allocation2], 4
      %s26 = int_to_ptr.vmem [resolvable:$true] %s25
      %32 = sst [smem:[#allocation7]] 128
      %s33 = scalar_lea.smem [#allocation7], 1
      %34 = sst [smem:[%s33]] 256
      %s35 = scalar_lea.smem [#allocation7], 2
      %36 = sst [smem:[%s35]] 1
      %s37 = scalar_lea.smem [#allocation7], 3
      %38 = sst [smem:[%s37]] 128
      %s39 = scalar_lea.smem [#allocation7], 4
      %40 = sst [smem:[%s39]] 128
      %s41 = scalar_lea.smem [#allocation7], 5
      %42 = sst [smem:[%s41]] 8
      %44 = dma.general %s0, 256, %s26, [#allocation3], [#allocation6], [#allocation7], %s24, 0
    $region5: #{tpu_custom_call.1} parent=1 // pred_fallthru
      _
    // Predicated region
    $region6: #{tpu_custom_call.1} parent=1 // pred_check
      _
    $region7: #{tpu_custom_call.1} parent=1 // pred_check_branch
      %46 = sbr.rel (0) target = $region9
    $region8: #{tpu_custom_call.1} parent=1 // pred_region
      %47 = dma.done [#allocation3], 512
    $region9: #{tpu_custom_call.1} parent=1 // pred_fallthru
      _
    %p48 = scmp.eq.s32.totalorder 0, 0
    // Predicated region
    $region10: #{tpu_custom_call.1} parent=1 // pred_check
      %p49 = pneg %p48
    $region11: #{tpu_custom_call.1} parent=1 // pred_check_branch
      %51 = sbr.rel (%p49) target = $region13
    $region12: #{tpu_custom_call.1} parent=1 // pred_region
      %52 = vst [vmem:[#allocation5] sm:$0xf] 0.0
    $region13: #{tpu_custom_call.1} parent=1 // pred_fallthru
      _
    %v53 = vld [vmem:[#allocation2] sm:$0xff]
    %v54 = vld [vmem:[#allocation2 + $0x8] sm:$0xff]
    %v55 = vld [vmem:[#allocation2 + $0x10] sm:$0xff]
    %v56 = vld [vmem:[#allocation2 + $0x18] sm:$0xff]
    %v57 = vlaneseq
    %v58 = vshrl.u32 %v57, 7
    %s59 = smul.u32 0, 8
    %s60 = ssub.s32 4, %s59
    %v61 = vstv %s60
    %vm62 = vcmp.lt.s32.totalorder %v58, %v61
    %v67 = vcombine.low %v53, %v54
    %v68 = vcombine.high %v53, %v54
    %v69 = vcombine.low %v55, %v56
    %v70 = vcombine.high %v55, %v56
    %v75 = vsel %vm62, %v67, 0.0
    %v76 = vsel %vm62, %v68, 0.0
    %v77 = vsel %vm62, %v69, 0.0
    %v78 = vsel %vm62, %v70, 0.0
    %v79 = vld [vmem:[#allocation5] sm:$0xf]
    %v80 = vrot.slane %v75, 4
    %v81 = vadd.f32 %v75, %v80
    %v82 = vrot.slane %v81, 2
    %v83 = vadd.f32 %v81, %v82
    %v84 = vrot.slane %v83, 1
    %v85 = vadd.f32 %v83, %v84
    %v86 = vrot.slane %v76, 4
    %v87 = vadd.f32 %v76, %v86
    %v88 = vrot.slane %v87, 2
    %v89 = vadd.f32 %v87, %v88
    %v90 = vrot.slane %v89, 1
    %v91 = vadd.f32 %v89, %v90
    %v92 = vrot.slane %v77, 4
    %v93 = vadd.f32 %v77, %v92
    %v94 = vrot.slane %v93, 2
    %v95 = vadd.f32 %v93, %v94
    %v96 = vrot.slane %v95, 1
    %v97 = vadd.f32 %v95, %v96
    %v98 = vrot.slane %v78, 4
    %v99 = vadd.f32 %v78, %v98
    %v100 = vrot.slane %v99, 2
    %v101 = vadd.f32 %v99, %v100
    %v102 = vrot.slane %v101, 1
    %v103 = vadd.f32 %v101, %v102
    %v108 = vcombine.low %v85, %v91
    %v110 = vunpack.c.l.s4 1983009808
    %v111 = vunpack.c.0.s8 %v110
    %v112 = vlaneseq
    %v113 = vshrl.u32 %v112, 7
    %v114 = vsub.s32 %v111, %v113
    %v115 = vrot.slane %v108, %v114
    %v116 = vcombine.low %v97, %v103
    %v118 = vunpack.c.l.s4 1983009808
    %v119 = vunpack.c.0.s8 %v118
    %v120 = vlaneseq
    %v121 = vshrl.u32 %v120, 7
    %v122 = vsub.s32 %v119, %v121
    %v123 = vrot.slane %v116, %v122
    %vm124 = vcmask 1044484
    %v125 = vsel %vm124, %v115, %v115
    %vm126 = vcmask 1046534
    %v127 = vsel %vm126, %v115, %v125
    %v128 = vrot.slane %v123, 7
    %vm129 = vcmask 1041409
    %v130 = vsel %vm129, %v128, %v127
    %vm131 = vcmask 1043459
    %v132 = vsel %vm131, %v128, %v130
    %vm133 = vcmask 1045509
    %v134 = vsel %vm133, %v128, %v132
    %vm135 = vcmask 1047559
    %v136 = vsel %vm135, %v128, %v134
    %v138 = vadd.f32 %v79, %v136
    %139 = vst [vmem:[#allocation5] sm:$0xf] %v138
    // Predicated region
    $region14: #{tpu_custom_call.1} parent=1 // pred_check
      _
    $region15: #{tpu_custom_call.1} parent=1 // pred_check_branch
      %141 = sbr.rel (0) target = $region17
    $region16: #{tpu_custom_call.1} parent=1 // pred_region
      %s143 = ssub.s32 64, 64
      %144 = vsyncadd [#allocation4], %s143
      %s146 = sshll.u32 [#allocation5], 4
      %s147 = int_to_ptr.vmem [resolvable:$true] %s146
      %149 = dma.vmem_to_hbm [thread:$0]  %s147, 64, %s1, [#allocation4]
    $region17: #{tpu_custom_call.1} parent=1 // pred_fallthru
      _
    // Predicated region
    $region18: #{tpu_custom_call.1} parent=1 // pred_check
      _
    $region19: #{tpu_custom_call.1} parent=1 // pred_check_branch
      %151 = sbr.rel (0) target = $region21
    $region20: #{tpu_custom_call.1} parent=1 // pred_region
      %152 = dma.done [#allocation4], 64
    $region21: #{tpu_custom_call.1} parent=1 // pred_fallthru
      _
    %153 = vsyncpa [#allocation3], 1
    %154 = vsyncpa [#allocation4], 1

</llo_original>
